<compile_context>
chip_gen: v7x
topology: tpu7x:2x2x1
jax: 0.10.0
libtpu: 0.0.40
codegen_flags: <defaults>
</compile_context>

<pallas_src>
import jax
import jax.numpy as jnp
from jax.experimental import pallas as pl
from jax.experimental.pallas import tpu as pltpu


# ------------------------------------------------------------------ kernels

def _gru_recurrence(gi, h0, whh, bhh_n, T, B, H, seq_dtype=None):
    """Shared statically-unrolled GRU recurrence.

    gi    : (T*B, 3H) f32 hoisted input projection (b_ih and b_hh[r,z] already folded in)
    h0    : (B, H)    f32 initial hidden
    whh   : (H, 3H)   f32 transposed hidden weights
    bhh_n : (1, H)    f32 hidden bias for the n gate (multiplied by r -> kept separate)
    Returns (h_T, seq_list) where seq_list is the per-step hidden list (only built if
    seq_dtype is not None).
    """
    h = h0
    seq = [] if seq_dtype is not None else None
    for t in range(T):
        gi_t = gi[t * B:(t + 1) * B, :]                               # (B, 3H), static slice
        gh = jnp.dot(h, whh, preferred_element_type=jnp.float32)      # (B, 3H)
        r = jax.nn.sigmoid(gi_t[:, 0 * H:1 * H] + gh[:, 0 * H:1 * H])
        z = jax.nn.sigmoid(gi_t[:, 1 * H:2 * H] + gh[:, 1 * H:2 * H])
        n = jnp.tanh(gi_t[:, 2 * H:3 * H] + r * (gh[:, 2 * H:3 * H] + bhh_n))
        h = (1.0 - z) * n + z * h
        if seq is not None:
            seq.append(h.astype(seq_dtype))
    return h, seq


def gru_layer_seq_kernel(x_ref, h0_ref, wih_ref, whh_ref, gib_ref, bhhn_ref, seq_ref):
    """One (non-final) GRU layer, full sequence output. Single invocation, no grid.

    x_ref   : (T*B, Din) time-major-flattened input
    h0_ref  : (B, H)
    wih_ref : (Din, 3H)   pre-transposed W_ih
    whh_ref : (H, 3H)     pre-transposed W_hh
    gib_ref : (1, 3H)     b_ih + [b_hh_r, b_hh_z, 0]
    bhhn_ref: (1, H)      b_hh_n
    seq_ref : (T*B, H)    per-step hidden output (consumed by the next layer)
    """
    B, H = h0_ref.shape
    T = x_ref.shape[0] // B

    # Hoisted input projection for all timesteps (one MXU call).
    gi = jnp.dot(x_ref[...], wih_ref[...],
                 preferred_element_type=jnp.float32) + gib_ref[...]

    _, seq = _gru_recurrence(gi, h0_ref[...].astype(jnp.float32), whh_ref[...],
                             bhhn_ref[...], T, B, H, seq_dtype=seq_ref.dtype)
    # Single lane-dense full-array store instead of T partial stores.
    seq_ref[...] = jnp.concatenate(seq, axis=0)


def gru_last_layer_fc_kernel(x_ref, h0_ref, wih_ref, whh_ref, gib_ref, bhhn_ref,
                             fcw_ref, fcb_ref, o_ref):
    """Final GRU layer fused with fc + (identity dropout) + ReLU. Single invocation.

    x_ref  : (T*B, Din)   h0_ref: (B, H)
    wih_ref: (Din, 3H)    whh_ref: (H, 3H)
    gib_ref: (1, 3H)      bhhn_ref: (1, H)
    fcw_ref: (H, O)       fcb_ref: (1, O)
    o_ref  : (B, O)
    """
    B, H = h0_ref.shape
    T = x_ref.shape[0] // B

    gi = jnp.dot(x_ref[...], wih_ref[...],
                 preferred_element_type=jnp.float32) + gib_ref[...]

    h, _ = _gru_recurrence(gi, h0_ref[...].astype(jnp.float32), whh_ref[...],
                           bhhn_ref[...], T, B, H, seq_dtype=None)

    # fc + (dropout == identity in eval) + ReLU, fused into the same kernel.
    y = jnp.dot(h, fcw_ref[...], preferred_element_type=jnp.float32) + fcb_ref[...]
    o_ref[...] = jnp.maximum(y, 0.0).astype(o_ref.dtype)


# ------------------------------------------------------------------ wrappers

def _prep_layer_params(lp):
    """Pre-transpose weights and fold biases (free XLA-side work)."""
    H = lp["w_hh"].shape[1]
    wih_t = jnp.transpose(lp["w_ih"])                      # (Din, 3H)
    whh_t = jnp.transpose(lp["w_hh"])                      # (H, 3H)
    # r/z gates always add b_ih + b_hh before the sigmoid -> fold both into the
    # hoisted input-projection bias.  The n-gate hidden bias is gated by r, keep it apart.
    gi_bias = lp["b_ih"] + jnp.concatenate(
        [lp["b_hh"][:2 * H], jnp.zeros((H,), lp["b_hh"].dtype)])
    bhh_n = lp["b_hh"][2 * H:]
    return wih_t, whh_t, gi_bias[None, :], bhh_n[None, :]


_VMEM_SPEC = pl.BlockSpec(memory_space=pltpu.MemorySpace.VMEM)


def gru_layer_seq(x_flat, h0_l, lp):
    """x_flat: (T*B, Din). Returns seq (T*B, H) for the next layer."""
    TB = x_flat.shape[0]
    B, H = h0_l.shape
    wih_t, whh_t, gi_bias, bhh_n = _prep_layer_params(lp)
    return pl.pallas_call(
        gru_layer_seq_kernel,
        out_shape=jax.ShapeDtypeStruct((TB, H), jnp.float32),
        in_specs=[_VMEM_SPEC] * 6,
        out_specs=_VMEM_SPEC,
    )(x_flat, h0_l, wih_t, whh_t, gi_bias, bhh_n)


def gru_last_layer_fc(x_flat, h0_l, lp, fc_w, fc_b):
    """Final GRU layer + fc + ReLU in one pallas_call. Returns (B, O)."""
    B, H = h0_l.shape
    O = fc_w.shape[0]
    wih_t, whh_t, gi_bias, bhh_n = _prep_layer_params(lp)
    return pl.pallas_call(
        gru_last_layer_fc_kernel,
        out_shape=jax.ShapeDtypeStruct((B, O), jnp.float32),
        in_specs=[_VMEM_SPEC] * 8,
        out_specs=_VMEM_SPEC,
    )(x_flat, h0_l, wih_t, whh_t, gi_bias, bhh_n,
      jnp.transpose(fc_w), fc_b[None, :])


def gru_model_forward(x, h0, params):
    """x: (B, T, D) batch-first.  h0: (layerNum, B, H).  Returns (B, O)."""
    B, T, D = x.shape
    # Time-major, flattened to (T*B, D) so the hoisted input projection is one matmul.
    layer_in = jnp.transpose(x, (1, 0, 2)).reshape(T * B, D)
    L = len(params["layers"])
    for l in range(L - 1):
        layer_in = gru_layer_seq(layer_in, h0[l], params["layers"][l])
    return gru_last_layer_fc(layer_in, h0[L - 1], params["layers"][L - 1],
                             params["fc_w"], params["fc_b"])


# ------------------------------------------------------------------ pure-JAX reference

def gru_model_ref(x, h0, params):
    layer_in = x
    hT = None
    for l, lp in enumerate(params["layers"]):
        H = lp["w_hh"].shape[1]

        def step(h, x_t, lp=lp, H=H):
            gi = x_t @ lp["w_ih"].T + lp["b_ih"]
            gh = h @ lp["w_hh"].T + lp["b_hh"]
            r = jax.nn.sigmoid(gi[:, :H] + gh[:, :H])
            z = jax.nn.sigmoid(gi[:, H:2 * H] + gh[:, H:2 * H])
            n = jnp.tanh(gi[:, 2 * H:] + r * gh[:, 2 * H:])
            h_new = (1.0 - z) * n + z * h
            return h_new, h_new

        hT, seq = jax.lax.scan(step, h0[l], jnp.transpose(layer_in, (1, 0, 2)))
        layer_in = jnp.transpose(seq, (1, 0, 2))
    out = hT @ params["fc_w"].T + params["fc_b"]
    return jnp.maximum(out, 0.0)


# ------------------------------------------------------------------ main

if __name__ == "__main__":
    # GRUModel(inputDim=4, hiddenNum=32, outputDim=4, layerNum=1, cell='GRU')
    B, T, D, H, O, L = 2, 8, 4, 32, 4, 1

    key = jax.random.PRNGKey(0)
    k_x, k_h0, k_fc_w, k_fc_b, k_layers = jax.random.split(key, 5)

    # deterministic parameter init (PyTorch-style uniform(-1/sqrt(H), 1/sqrt(H)))
    bound = 1.0 / jnp.sqrt(jnp.float32(H))
    layers = []
    for l in range(L):
        din = D if l == 0 else H
        ks = jax.random.split(jax.random.fold_in(k_layers, l), 4)
        layers.append({
            "w_ih": jax.random.uniform(ks[0], (3 * H, din), jnp.float32, -bound, bound),
            "w_hh": jax.random.uniform(ks[1], (3 * H, H), jnp.float32, -bound, bound),
            "b_ih": jax.random.uniform(ks[2], (3 * H,), jnp.float32, -bound, bound),
            "b_hh": jax.random.uniform(ks[3], (3 * H,), jnp.float32, -bound, bound),
        })
    params = {
        "layers": layers,
        "fc_w": jax.random.uniform(k_fc_w, (O, H), jnp.float32, -bound, bound),
        "fc_b": jax.random.uniform(k_fc_b, (O,), jnp.float32, -bound, bound),
    }

    x = jax.random.normal(k_x, (B, T, D), jnp.float32)
    h0 = jax.random.normal(k_h0, (L, B, H), jnp.float32)   # torch.randn(layerNum, B, H)

    forward = jax.jit(gru_model_forward)
    out = jax.block_until_ready(forward(x, h0, params))
    ref = jax.block_until_ready(gru_model_ref(x, h0, params))

    assert out.shape == (B, O), out.shape
    assert jnp.allclose(out, ref, atol=1e-5, rtol=1e-5), (out, ref)
    print("KERNEL_OK")
</pallas_src>

<mosaic_0001>
module attributes {stable_mosaic.version = 11 : i64} {
  func.func @gru_last_layer_fc_kernel(%arg0: memref<16x4xf32, #tpu.memory_space<vmem>>, %arg1: memref<2x32xf32, #tpu.memory_space<vmem>>, %arg2: memref<4x96xf32, #tpu.memory_space<vmem>>, %arg3: memref<32x96xf32, #tpu.memory_space<vmem>>, %arg4: memref<1x96xf32, #tpu.memory_space<vmem>>, %arg5: memref<1x32xf32, #tpu.memory_space<vmem>>, %arg6: memref<32x4xf32, #tpu.memory_space<vmem>>, %arg7: memref<1x4xf32, #tpu.memory_space<vmem>>, %arg8: memref<2x4xf32, #tpu.memory_space<vmem>>) attributes {dimension_semantics = [], scalar_prefetch = 0 : i64, scratch_operands = 0 : i64, tpu.core_type = #tpu.core_type<tc>} {
    %c0 = arith.constant 0 : index
    %c0_0 = arith.constant 0 : index
    %0 = vector.load %arg0[%c0, %c0_0] : memref<16x4xf32, #tpu.memory_space<vmem>>, vector<16x4xf32>
    %c0_1 = arith.constant 0 : index
    %c0_2 = arith.constant 0 : index
    %1 = vector.load %arg2[%c0_1, %c0_2] : memref<4x96xf32, #tpu.memory_space<vmem>>, vector<4x96xf32>
    %cst = arith.constant dense<0.000000e+00> : vector<16x96xf32>
    %2 = tpu.matmul %0, %1, %cst {dimension_numbers = #tpu.dot_dimension_numbers<[1], [0], [0], [1], [0, 0, 1, 1], [], []>} : vector<16x4xf32>, vector<4x96xf32>, vector<16x96xf32> -> vector<16x96xf32>
    %c0_3 = arith.constant 0 : index
    %c0_4 = arith.constant 0 : index
    %3 = vector.load %arg4[%c0_3, %c0_4] : memref<1x96xf32, #tpu.memory_space<vmem>>, vector<1x96xf32>
    %4 = vector.broadcast %3 : vector<1x96xf32> to vector<16x96xf32>
    %5 = arith.addf %2, %4 : vector<16x96xf32>
    %c0_5 = arith.constant 0 : index
    %c0_6 = arith.constant 0 : index
    %6 = vector.load %arg1[%c0_5, %c0_6] : memref<2x32xf32, #tpu.memory_space<vmem>>, vector<2x32xf32>
    %c0_7 = arith.constant 0 : index
    %c0_8 = arith.constant 0 : index
    %7 = vector.load %arg3[%c0_7, %c0_8] : memref<32x96xf32, #tpu.memory_space<vmem>>, vector<32x96xf32>
    %c0_9 = arith.constant 0 : index
    %c0_10 = arith.constant 0 : index
    %8 = vector.load %arg5[%c0_9, %c0_10] : memref<1x32xf32, #tpu.memory_space<vmem>>, vector<1x32xf32>
    %9 = vector.extract_strided_slice %5 {offsets = [0, 0], sizes = [2, 96], strides = [1, 1]} : vector<16x96xf32> to vector<2x96xf32>
    %cst_11 = arith.constant dense<0.000000e+00> : vector<2x96xf32>
    %10 = tpu.matmul %6, %7, %cst_11 {dimension_numbers = #tpu.dot_dimension_numbers<[1], [0], [0], [1], [0, 0, 1, 1], [], []>} : vector<2x32xf32>, vector<32x96xf32>, vector<2x96xf32> -> vector<2x96xf32>
    %11 = vector.extract_strided_slice %9 {offsets = [0, 0], sizes = [2, 32], strides = [1, 1]} : vector<2x96xf32> to vector<2x32xf32>
    %12 = vector.extract_strided_slice %10 {offsets = [0, 0], sizes = [2, 32], strides = [1, 1]} : vector<2x96xf32> to vector<2x32xf32>
    %13 = arith.addf %11, %12 : vector<2x32xf32>
    %14 = arith.negf %13 : vector<2x32xf32>
    %15 = math.exp %14 : vector<2x32xf32>
    %cst_12 = arith.constant 1.000000e+00 : f32
    %16 = vector.broadcast %cst_12 : f32 to vector<2x32xf32>
    %17 = arith.addf %16, %15 : vector<2x32xf32>
    %18 = arith.divf %16, %17 : vector<2x32xf32>
    %19 = vector.extract_strided_slice %9 {offsets = [0, 32], sizes = [2, 32], strides = [1, 1]} : vector<2x96xf32> to vector<2x32xf32>
    %20 = vector.extract_strided_slice %10 {offsets = [0, 32], sizes = [2, 32], strides = [1, 1]} : vector<2x96xf32> to vector<2x32xf32>
    %21 = arith.addf %19, %20 : vector<2x32xf32>
    %22 = arith.negf %21 : vector<2x32xf32>
    %23 = math.exp %22 : vector<2x32xf32>
    %cst_13 = arith.constant 1.000000e+00 : f32
    %24 = vector.broadcast %cst_13 : f32 to vector<2x32xf32>
    %25 = arith.addf %24, %23 : vector<2x32xf32>
    %26 = arith.divf %24, %25 : vector<2x32xf32>
    %27 = vector.extract_strided_slice %9 {offsets = [0, 64], sizes = [2, 32], strides = [1, 1]} : vector<2x96xf32> to vector<2x32xf32>
    %28 = vector.extract_strided_slice %10 {offsets = [0, 64], sizes = [2, 32], strides = [1, 1]} : vector<2x96xf32> to vector<2x32xf32>
    %29 = vector.broadcast %8 : vector<1x32xf32> to vector<2x32xf32>
    %30 = arith.addf %28, %29 : vector<2x32xf32>
    %31 = arith.mulf %18, %30 : vector<2x32xf32>
    %32 = arith.addf %27, %31 : vector<2x32xf32>
    %33 = math.tanh %32 : vector<2x32xf32>
    %cst_14 = arith.constant 1.000000e+00 : f32
    %34 = vector.broadcast %cst_14 : f32 to vector<2x32xf32>
    %35 = arith.subf %34, %26 : vector<2x32xf32>
    %36 = arith.mulf %35, %33 : vector<2x32xf32>
    %37 = arith.mulf %26, %6 : vector<2x32xf32>
    %38 = arith.addf %36, %37 : vector<2x32xf32>
    %39 = vector.extract_strided_slice %5 {offsets = [2, 0], sizes = [2, 96], strides = [1, 1]} : vector<16x96xf32> to vector<2x96xf32>
    %cst_15 = arith.constant dense<0.000000e+00> : vector<2x96xf32>
    %40 = tpu.matmul %38, %7, %cst_15 {dimension_numbers = #tpu.dot_dimension_numbers<[1], [0], [0], [1], [0, 0, 1, 1], [], []>} : vector<2x32xf32>, vector<32x96xf32>, vector<2x96xf32> -> vector<2x96xf32>
    %41 = vector.extract_strided_slice %39 {offsets = [0, 0], sizes = [2, 32], strides = [1, 1]} : vector<2x96xf32> to vector<2x32xf32>
    %42 = vector.extract_strided_slice %40 {offsets = [0, 0], sizes = [2, 32], strides = [1, 1]} : vector<2x96xf32> to vector<2x32xf32>
    %43 = arith.addf %41, %42 : vector<2x32xf32>
    %44 = arith.negf %43 : vector<2x32xf32>
    %45 = math.exp %44 : vector<2x32xf32>
    %cst_16 = arith.constant 1.000000e+00 : f32
    %46 = vector.broadcast %cst_16 : f32 to vector<2x32xf32>
    %47 = arith.addf %46, %45 : vector<2x32xf32>
    %48 = arith.divf %46, %47 : vector<2x32xf32>
    %49 = vector.extract_strided_slice %39 {offsets = [0, 32], sizes = [2, 32], strides = [1, 1]} : vector<2x96xf32> to vector<2x32xf32>
    %50 = vector.extract_strided_slice %40 {offsets = [0, 32], sizes = [2, 32], strides = [1, 1]} : vector<2x96xf32> to vector<2x32xf32>
    %51 = arith.addf %49, %50 : vector<2x32xf32>
    %52 = arith.negf %51 : vector<2x32xf32>
    %53 = math.exp %52 : vector<2x32xf32>
    %cst_17 = arith.constant 1.000000e+00 : f32
    %54 = vector.broadcast %cst_17 : f32 to vector<2x32xf32>
    %55 = arith.addf %54, %53 : vector<2x32xf32>
    %56 = arith.divf %54, %55 : vector<2x32xf32>
    %57 = vector.extract_strided_slice %39 {offsets = [0, 64], sizes = [2, 32], strides = [1, 1]} : vector<2x96xf32> to vector<2x32xf32>
    %58 = vector.extract_strided_slice %40 {offsets = [0, 64], sizes = [2, 32], strides = [1, 1]} : vector<2x96xf32> to vector<2x32xf32>
    %59 = vector.broadcast %8 : vector<1x32xf32> to vector<2x32xf32>
    %60 = arith.addf %58, %59 : vector<2x32xf32>
    %61 = arith.mulf %48, %60 : vector<2x32xf32>
    %62 = arith.addf %57, %61 : vector<2x32xf32>
    %63 = math.tanh %62 : vector<2x32xf32>
    %cst_18 = arith.constant 1.000000e+00 : f32
    %64 = vector.broadcast %cst_18 : f32 to vector<2x32xf32>
    %65 = arith.subf %64, %56 : vector<2x32xf32>
    %66 = arith.mulf %65, %63 : vector<2x32xf32>
    %67 = arith.mulf %56, %38 : vector<2x32xf32>
    %68 = arith.addf %66, %67 : vector<2x32xf32>
    %69 = vector.extract_strided_slice %5 {offsets = [4, 0], sizes = [2, 96], strides = [1, 1]} : vector<16x96xf32> to vector<2x96xf32>
    %cst_19 = arith.constant dense<0.000000e+00> : vector<2x96xf32>
    %70 = tpu.matmul %68, %7, %cst_19 {dimension_numbers = #tpu.dot_dimension_numbers<[1], [0], [0], [1], [0, 0, 1, 1], [], []>} : vector<2x32xf32>, vector<32x96xf32>, vector<2x96xf32> -> vector<2x96xf32>
    %71 = vector.extract_strided_slice %69 {offsets = [0, 0], sizes = [2, 32], strides = [1, 1]} : vector<2x96xf32> to vector<2x32xf32>
    %72 = vector.extract_strided_slice %70 {offsets = [0, 0], sizes = [2, 32], strides = [1, 1]} : vector<2x96xf32> to vector<2x32xf32>
    %73 = arith.addf %71, %72 : vector<2x32xf32>
    %74 = arith.negf %73 : vector<2x32xf32>
    %75 = math.exp %74 : vector<2x32xf32>
    %cst_20 = arith.constant 1.000000e+00 : f32
    %76 = vector.broadcast %cst_20 : f32 to vector<2x32xf32>
    %77 = arith.addf %76, %75 : vector<2x32xf32>
    %78 = arith.divf %76, %77 : vector<2x32xf32>
    %79 = vector.extract_strided_slice %69 {offsets = [0, 32], sizes = [2, 32], strides = [1, 1]} : vector<2x96xf32> to vector<2x32xf32>
    %80 = vector.extract_strided_slice %70 {offsets = [0, 32], sizes = [2, 32], strides = [1, 1]} : vector<2x96xf32> to vector<2x32xf32>
    %81 = arith.addf %79, %80 : vector<2x32xf32>
    %82 = arith.negf %81 : vector<2x32xf32>
    %83 = math.exp %82 : vector<2x32xf32>
    %cst_21 = arith.constant 1.000000e+00 : f32
    %84 = vector.broadcast %cst_21 : f32 to vector<2x32xf32>
    %85 = arith.addf %84, %83 : vector<2x32xf32>
    %86 = arith.divf %84, %85 : vector<2x32xf32>
    %87 = vector.extract_strided_slice %69 {offsets = [0, 64], sizes = [2, 32], strides = [1, 1]} : vector<2x96xf32> to vector<2x32xf32>
    %88 = vector.extract_strided_slice %70 {offsets = [0, 64], sizes = [2, 32], strides = [1, 1]} : vector<2x96xf32> to vector<2x32xf32>
    %89 = vector.broadcast %8 : vector<1x32xf32> to vector<2x32xf32>
    %90 = arith.addf %88, %89 : vector<2x32xf32>
    %91 = arith.mulf %78, %90 : vector<2x32xf32>
    %92 = arith.addf %87, %91 : vector<2x32xf32>
    %93 = math.tanh %92 : vector<2x32xf32>
    %cst_22 = arith.constant 1.000000e+00 : f32
    %94 = vector.broadcast %cst_22 : f32 to vector<2x32xf32>
    %95 = arith.subf %94, %86 : vector<2x32xf32>
    %96 = arith.mulf %95, %93 : vector<2x32xf32>
    %97 = arith.mulf %86, %68 : vector<2x32xf32>
    %98 = arith.addf %96, %97 : vector<2x32xf32>
    %99 = vector.extract_strided_slice %5 {offsets = [6, 0], sizes = [2, 96], strides = [1, 1]} : vector<16x96xf32> to vector<2x96xf32>
    %cst_23 = arith.constant dense<0.000000e+00> : vector<2x96xf32>
    %100 = tpu.matmul %98, %7, %cst_23 {dimension_numbers = #tpu.dot_dimension_numbers<[1], [0], [0], [1], [0, 0, 1, 1], [], []>} : vector<2x32xf32>, vector<32x96xf32>, vector<2x96xf32> -> vector<2x96xf32>
    %101 = vector.extract_strided_slice %99 {offsets = [0, 0], sizes = [2, 32], strides = [1, 1]} : vector<2x96xf32> to vector<2x32xf32>
    %102 = vector.extract_strided_slice %100 {offsets = [0, 0], sizes = [2, 32], strides = [1, 1]} : vector<2x96xf32> to vector<2x32xf32>
    %103 = arith.addf %101, %102 : vector<2x32xf32>
    %104 = arith.negf %103 : vector<2x32xf32>
    %105 = math.exp %104 : vector<2x32xf32>
    %cst_24 = arith.constant 1.000000e+00 : f32
    %106 = vector.broadcast %cst_24 : f32 to vector<2x32xf32>
    %107 = arith.addf %106, %105 : vector<2x32xf32>
    %108 = arith.divf %106, %107 : vector<2x32xf32>
    %109 = vector.extract_strided_slice %99 {offsets = [0, 32], sizes = [2, 32], strides = [1, 1]} : vector<2x96xf32> to vector<2x32xf32>
    %110 = vector.extract_strided_slice %100 {offsets = [0, 32], sizes = [2, 32], strides = [1, 1]} : vector<2x96xf32> to vector<2x32xf32>
    %111 = arith.addf %109, %110 : vector<2x32xf32>
    %112 = arith.negf %111 : vector<2x32xf32>
    %113 = math.exp %112 : vector<2x32xf32>
    %cst_25 = arith.constant 1.000000e+00 : f32
    %114 = vector.broadcast %cst_25 : f32 to vector<2x32xf32>
    %115 = arith.addf %114, %113 : vector<2x32xf32>
    %116 = arith.divf %114, %115 : vector<2x32xf32>
    %117 = vector.extract_strided_slice %99 {offsets = [0, 64], sizes = [2, 32], strides = [1, 1]} : vector<2x96xf32> to vector<2x32xf32>
    %118 = vector.extract_strided_slice %100 {offsets = [0, 64], sizes = [2, 32], strides = [1, 1]} : vector<2x96xf32> to vector<2x32xf32>
    %119 = vector.broadcast %8 : vector<1x32xf32> to vector<2x32xf32>
    %120 = arith.addf %118, %119 : vector<2x32xf32>
    %121 = arith.mulf %108, %120 : vector<2x32xf32>
    %122 = arith.addf %117, %121 : vector<2x32xf32>
    %123 = math.tanh %122 : vector<2x32xf32>
    %cst_26 = arith.constant 1.000000e+00 : f32
    %124 = vector.broadcast %cst_26 : f32 to vector<2x32xf32>
    %125 = arith.subf %124, %116 : vector<2x32xf32>
    %126 = arith.mulf %125, %123 : vector<2x32xf32>
    %127 = arith.mulf %116, %98 : vector<2x32xf32>
    %128 = arith.addf %126, %127 : vector<2x32xf32>
    %129 = vector.extract_strided_slice %5 {offsets = [8, 0], sizes = [2, 96], strides = [1, 1]} : vector<16x96xf32> to vector<2x96xf32>
    %cst_27 = arith.constant dense<0.000000e+00> : vector<2x96xf32>
    %130 = tpu.matmul %128, %7, %cst_27 {dimension_numbers = #tpu.dot_dimension_numbers<[1], [0], [0], [1], [0, 0, 1, 1], [], []>} : vector<2x32xf32>, vector<32x96xf32>, vector<2x96xf32> -> vector<2x96xf32>
    %131 = vector.extract_strided_slice %129 {offsets = [0, 0], sizes = [2, 32], strides = [1, 1]} : vector<2x96xf32> to vector<2x32xf32>
    %132 = vector.extract_strided_slice %130 {offsets = [0, 0], sizes = [2, 32], strides = [1, 1]} : vector<2x96xf32> to vector<2x32xf32>
    %133 = arith.addf %131, %132 : vector<2x32xf32>
    %134 = arith.negf %133 : vector<2x32xf32>
    %135 = math.exp %134 : vector<2x32xf32>
    %cst_28 = arith.constant 1.000000e+00 : f32
    %136 = vector.broadcast %cst_28 : f32 to vector<2x32xf32>
    %137 = arith.addf %136, %135 : vector<2x32xf32>
    %138 = arith.divf %136, %137 : vector<2x32xf32>
    %139 = vector.extract_strided_slice %129 {offsets = [0, 32], sizes = [2, 32], strides = [1, 1]} : vector<2x96xf32> to vector<2x32xf32>
    %140 = vector.extract_strided_slice %130 {offsets = [0, 32], sizes = [2, 32], strides = [1, 1]} : vector<2x96xf32> to vector<2x32xf32>
    %141 = arith.addf %139, %140 : vector<2x32xf32>
    %142 = arith.negf %141 : vector<2x32xf32>
    %143 = math.exp %142 : vector<2x32xf32>
    %cst_29 = arith.constant 1.000000e+00 : f32
    %144 = vector.broadcast %cst_29 : f32 to vector<2x32xf32>
    %145 = arith.addf %144, %143 : vector<2x32xf32>
    %146 = arith.divf %144, %145 : vector<2x32xf32>
    %147 = vector.extract_strided_slice %129 {offsets = [0, 64], sizes = [2, 32], strides = [1, 1]} : vector<2x96xf32> to vector<2x32xf32>
    %148 = vector.extract_strided_slice %130 {offsets = [0, 64], sizes = [2, 32], strides = [1, 1]} : vector<2x96xf32> to vector<2x32xf32>
    %149 = vector.broadcast %8 : vector<1x32xf32> to vector<2x32xf32>
    %150 = arith.addf %148, %149 : vector<2x32xf32>
    %151 = arith.mulf %138, %150 : vector<2x32xf32>
    %152 = arith.addf %147, %151 : vector<2x32xf32>
    %153 = math.tanh %152 : vector<2x32xf32>
    %cst_30 = arith.constant 1.000000e+00 : f32
    %154 = vector.broadcast %cst_30 : f32 to vector<2x32xf32>
    %155 = arith.subf %154, %146 : vector<2x32xf32>
    %156 = arith.mulf %155, %153 : vector<2x32xf32>
    %157 = arith.mulf %146, %128 : vector<2x32xf32>
    %158 = arith.addf %156, %157 : vector<2x32xf32>
    %159 = vector.extract_strided_slice %5 {offsets = [10, 0], sizes = [2, 96], strides = [1, 1]} : vector<16x96xf32> to vector<2x96xf32>
    %cst_31 = arith.constant dense<0.000000e+00> : vector<2x96xf32>
    %160 = tpu.matmul %158, %7, %cst_31 {dimension_numbers = #tpu.dot_dimension_numbers<[1], [0], [0], [1], [0, 0, 1, 1], [], []>} : vector<2x32xf32>, vector<32x96xf32>, vector<2x96xf32> -> vector<2x96xf32>
    %161 = vector.extract_strided_slice %159 {offsets = [0, 0], sizes = [2, 32], strides = [1, 1]} : vector<2x96xf32> to vector<2x32xf32>
    %162 = vector.extract_strided_slice %160 {offsets = [0, 0], sizes = [2, 32], strides = [1, 1]} : vector<2x96xf32> to vector<2x32xf32>
    %163 = arith.addf %161, %162 : vector<2x32xf32>
    %164 = arith.negf %163 : vector<2x32xf32>
    %165 = math.exp %164 : vector<2x32xf32>
    %cst_32 = arith.constant 1.000000e+00 : f32
    %166 = vector.broadcast %cst_32 : f32 to vector<2x32xf32>
    %167 = arith.addf %166, %165 : vector<2x32xf32>
    %168 = arith.divf %166, %167 : vector<2x32xf32>
    %169 = vector.extract_strided_slice %159 {offsets = [0, 32], sizes = [2, 32], strides = [1, 1]} : vector<2x96xf32> to vector<2x32xf32>
    %170 = vector.extract_strided_slice %160 {offsets = [0, 32], sizes = [2, 32], strides = [1, 1]} : vector<2x96xf32> to vector<2x32xf32>
    %171 = arith.addf %169, %170 : vector<2x32xf32>
    %172 = arith.negf %171 : vector<2x32xf32>
    %173 = math.exp %172 : vector<2x32xf32>
    %cst_33 = arith.constant 1.000000e+00 : f32
    %174 = vector.broadcast %cst_33 : f32 to vector<2x32xf32>
    %175 = arith.addf %174, %173 : vector<2x32xf32>
    %176 = arith.divf %174, %175 : vector<2x32xf32>
    %177 = vector.extract_strided_slice %159 {offsets = [0, 64], sizes = [2, 32], strides = [1, 1]} : vector<2x96xf32> to vector<2x32xf32>
    %178 = vector.extract_strided_slice %160 {offsets = [0, 64], sizes = [2, 32], strides = [1, 1]} : vector<2x96xf32> to vector<2x32xf32>
    %179 = vector.broadcast %8 : vector<1x32xf32> to vector<2x32xf32>
    %180 = arith.addf %178, %179 : vector<2x32xf32>
    %181 = arith.mulf %168, %180 : vector<2x32xf32>
    %182 = arith.addf %177, %181 : vector<2x32xf32>
    %183 = math.tanh %182 : vector<2x32xf32>
    %cst_34 = arith.constant 1.000000e+00 : f32
    %184 = vector.broadcast %cst_34 : f32 to vector<2x32xf32>
    %185 = arith.subf %184, %176 : vector<2x32xf32>
    %186 = arith.mulf %185, %183 : vector<2x32xf32>
    %187 = arith.mulf %176, %158 : vector<2x32xf32>
    %188 = arith.addf %186, %187 : vector<2x32xf32>
    %189 = vector.extract_strided_slice %5 {offsets = [12, 0], sizes = [2, 96], strides = [1, 1]} : vector<16x96xf32> to vector<2x96xf32>
    %cst_35 = arith.constant dense<0.000000e+00> : vector<2x96xf32>
    %190 = tpu.matmul %188, %7, %cst_35 {dimension_numbers = #tpu.dot_dimension_numbers<[1], [0], [0], [1], [0, 0, 1, 1], [], []>} : vector<2x32xf32>, vector<32x96xf32>, vector<2x96xf32> -> vector<2x96xf32>
    %191 = vector.extract_strided_slice %189 {offsets = [0, 0], sizes = [2, 32], strides = [1, 1]} : vector<2x96xf32> to vector<2x32xf32>
    %192 = vector.extract_strided_slice %190 {offsets = [0, 0], sizes = [2, 32], strides = [1, 1]} : vector<2x96xf32> to vector<2x32xf32>
    %193 = arith.addf %191, %192 : vector<2x32xf32>
    %194 = arith.negf %193 : vector<2x32xf32>
    %195 = math.exp %194 : vector<2x32xf32>
    %cst_36 = arith.constant 1.000000e+00 : f32
    %196 = vector.broadcast %cst_36 : f32 to vector<2x32xf32>
    %197 = arith.addf %196, %195 : vector<2x32xf32>
    %198 = arith.divf %196, %197 : vector<2x32xf32>
    %199 = vector.extract_strided_slice %189 {offsets = [0, 32], sizes = [2, 32], strides = [1, 1]} : vector<2x96xf32> to vector<2x32xf32>
    %200 = vector.extract_strided_slice %190 {offsets = [0, 32], sizes = [2, 32], strides = [1, 1]} : vector<2x96xf32> to vector<2x32xf32>
    %201 = arith.addf %199, %200 : vector<2x32xf32>
    %202 = arith.negf %201 : vector<2x32xf32>
    %203 = math.exp %202 : vector<2x32xf32>
    %cst_37 = arith.constant 1.000000e+00 : f32
    %204 = vector.broadcast %cst_37 : f32 to vector<2x32xf32>
    %205 = arith.addf %204, %203 : vector<2x32xf32>
    %206 = arith.divf %204, %205 : vector<2x32xf32>
    %207 = vector.extract_strided_slice %189 {offsets = [0, 64], sizes = [2, 32], strides = [1, 1]} : vector<2x96xf32> to vector<2x32xf32>
    %208 = vector.extract_strided_slice %190 {offsets = [0, 64], sizes = [2, 32], strides = [1, 1]} : vector<2x96xf32> to vector<2x32xf32>
    %209 = vector.broadcast %8 : vector<1x32xf32> to vector<2x32xf32>
    %210 = arith.addf %208, %209 : vector<2x32xf32>
    %211 = arith.mulf %198, %210 : vector<2x32xf32>
    %212 = arith.addf %207, %211 : vector<2x32xf32>
    %213 = math.tanh %212 : vector<2x32xf32>
    %cst_38 = arith.constant 1.000000e+00 : f32
    %214 = vector.broadcast %cst_38 : f32 to vector<2x32xf32>
    %215 = arith.subf %214, %206 : vector<2x32xf32>
    %216 = arith.mulf %215, %213 : vector<2x32xf32>
    %217 = arith.mulf %206, %188 : vector<2x32xf32>
    %218 = arith.addf %216, %217 : vector<2x32xf32>
    %219 = vector.extract_strided_slice %5 {offsets = [14, 0], sizes = [2, 96], strides = [1, 1]} : vector<16x96xf32> to vector<2x96xf32>
    %cst_39 = arith.constant dense<0.000000e+00> : vector<2x96xf32>
    %220 = tpu.matmul %218, %7, %cst_39 {dimension_numbers = #tpu.dot_dimension_numbers<[1], [0], [0], [1], [0, 0, 1, 1], [], []>} : vector<2x32xf32>, vector<32x96xf32>, vector<2x96xf32> -> vector<2x96xf32>
    %221 = vector.extract_strided_slice %219 {offsets = [0, 0], sizes = [2, 32], strides = [1, 1]} : vector<2x96xf32> to vector<2x32xf32>
    %222 = vector.extract_strided_slice %220 {offsets = [0, 0], sizes = [2, 32], strides = [1, 1]} : vector<2x96xf32> to vector<2x32xf32>
    %223 = arith.addf %221, %222 : vector<2x32xf32>
    %224 = arith.negf %223 : vector<2x32xf32>
    %225 = math.exp %224 : vector<2x32xf32>
    %cst_40 = arith.constant 1.000000e+00 : f32
    %226 = vector.broadcast %cst_40 : f32 to vector<2x32xf32>
    %227 = arith.addf %226, %225 : vector<2x32xf32>
    %228 = arith.divf %226, %227 : vector<2x32xf32>
    %229 = vector.extract_strided_slice %219 {offsets = [0, 32], sizes = [2, 32], strides = [1, 1]} : vector<2x96xf32> to vector<2x32xf32>
    %230 = vector.extract_strided_slice %220 {offsets = [0, 32], sizes = [2, 32], strides = [1, 1]} : vector<2x96xf32> to vector<2x32xf32>
    %231 = arith.addf %229, %230 : vector<2x32xf32>
    %232 = arith.negf %231 : vector<2x32xf32>
    %233 = math.exp %232 : vector<2x32xf32>
    %cst_41 = arith.constant 1.000000e+00 : f32
    %234 = vector.broadcast %cst_41 : f32 to vector<2x32xf32>
    %235 = arith.addf %234, %233 : vector<2x32xf32>
    %236 = arith.divf %234, %235 : vector<2x32xf32>
    %237 = vector.extract_strided_slice %219 {offsets = [0, 64], sizes = [2, 32], strides = [1, 1]} : vector<2x96xf32> to vector<2x32xf32>
    %238 = vector.extract_strided_slice %220 {offsets = [0, 64], sizes = [2, 32], strides = [1, 1]} : vector<2x96xf32> to vector<2x32xf32>
    %239 = vector.broadcast %8 : vector<1x32xf32> to vector<2x32xf32>
    %240 = arith.addf %238, %239 : vector<2x32xf32>
    %241 = arith.mulf %228, %240 : vector<2x32xf32>
    %242 = arith.addf %237, %241 : vector<2x32xf32>
    %243 = math.tanh %242 : vector<2x32xf32>
    %cst_42 = arith.constant 1.000000e+00 : f32
    %244 = vector.broadcast %cst_42 : f32 to vector<2x32xf32>
    %245 = arith.subf %244, %236 : vector<2x32xf32>
    %246 = arith.mulf %245, %243 : vector<2x32xf32>
    %247 = arith.mulf %236, %218 : vector<2x32xf32>
    %248 = arith.addf %246, %247 : vector<2x32xf32>
    %c0_43 = arith.constant 0 : index
    %c0_44 = arith.constant 0 : index
    %249 = vector.load %arg6[%c0_43, %c0_44] : memref<32x4xf32, #tpu.memory_space<vmem>>, vector<32x4xf32>
    %cst_45 = arith.constant dense<0.000000e+00> : vector<2x4xf32>
    %250 = tpu.matmul %248, %249, %cst_45 {dimension_numbers = #tpu.dot_dimension_numbers<[1], [0], [0], [1], [0, 0, 1, 1], [], []>} : vector<2x32xf32>, vector<32x4xf32>, vector<2x4xf32> -> vector<2x4xf32>
    %c0_46 = arith.constant 0 : index
    %c0_47 = arith.constant 0 : index
    %251 = vector.load %arg7[%c0_46, %c0_47] : memref<1x4xf32, #tpu.memory_space<vmem>>, vector<1x4xf32>
    %252 = vector.broadcast %251 : vector<1x4xf32> to vector<2x4xf32>
    %253 = arith.addf %250, %252 : vector<2x4xf32>
    %cst_48 = arith.constant 0.000000e+00 : f32
    %254 = vector.broadcast %cst_48 : f32 to vector<2x4xf32>
    %255 = arith.maximumf %253, %254 : vector<2x4xf32>
    %c0_49 = arith.constant 0 : index
    %c0_50 = arith.constant 0 : index
    %256 = vector.load %arg8[%c0_49, %c0_50] : memref<2x4xf32, #tpu.memory_space<vmem>>, vector<2x4xf32>
    tpu.vector_store %arg8[%c0_49, %c0_50], %255 {strides = array<i32>} : memref<2x4xf32, #tpu.memory_space<vmem>>, vector<2x4xf32>,
    return
  }
}

</mosaic_0001>

<llo_original>
// kernel: gru_model_forward.1
$region0: #{gru_model_forward.1}
  #allocation0 [shape = 'u32[]', space=smem, size = 0x4, offset = 0x4, fixed_abs, tag = 'smem constant byte address 0x4 - core index']
  #allocation1 [shape = 'u32[144,128]{1,0:T(1,128)}', space=vmem, size = 0x12000, scoped, tag = 'internal scratch']
  %s0 = inlined_call_operand.vmem [shape: f32[16,4], index: 0, kind: input, shape index: {}]
  %s1 = inlined_call_operand.vmem [shape: f32[2,32], index: 1, kind: input, shape index: {}]
  %s2 = inlined_call_operand.vmem [shape: f32[4,96], index: 2, kind: input, shape index: {}]
  %s3 = inlined_call_operand.vmem [shape: f32[32,96], index: 3, kind: input, shape index: {}]
  %s4 = inlined_call_operand.vmem [shape: f32[1,96], index: 4, kind: input, shape index: {}]
  %s5 = inlined_call_operand.vmem [shape: f32[1,32], index: 5, kind: input, shape index: {}]
  %s6 = inlined_call_operand.vmem [shape: f32[32,4], index: 6, kind: input, shape index: {}]
  %s7 = inlined_call_operand.vmem [shape: f32[1,4], index: 7, kind: input, shape index: {}]
  %s8 = inlined_call_operand.hbm [shape: f32[2,4], index: 8, kind: output, shape index: {}]
  %s9 = sld [smem:[#allocation0]]
  $region42: #{gru_model_forward.1} parent=0
    _
  %s11 = ssub.s32 1, %s9
  %s12 = scalar_select 0, %s11, %s9
  $region1: #{gru_model_forward.1} parent=0
    #allocation2 [shape = 'u8[1024]{0}', space=vmem, size = 0x400, scoped, tag = 'output window, operand 0, single buffered']
    #allocation3 [shape = 's32[1]{0}', space=sflag, size = 0x4, scoped, tag = 'scoped memory for gru_model_forward.1']
    %13 = vsyncpa [#allocation3], 0
    // Predicated region
    $region2: #{gru_model_forward.1} parent=1 // pred_check
      _
    $region3: #{gru_model_forward.1} parent=1 // pred_check_branch
      %15 = sbr.rel (0) target = $region5
    $region4: #{gru_model_forward.1} parent=1 // pred_region
      _
    $region5: #{gru_model_forward.1} parent=1 // pred_fallthru
      _
    // Predicated region
    $region6: #{gru_model_forward.1} parent=1 // pred_check
      _
    $region7: #{gru_model_forward.1} parent=1 // pred_check_branch
      %17 = sbr.rel (0) target = $region9
    $region8: #{gru_model_forward.1} parent=1 // pred_region
      _
    $region9: #{gru_model_forward.1} parent=1 // pred_fallthru
      _
    // Predicated region
    $region10: #{gru_model_forward.1} parent=1 // pred_check
      _
    $region11: #{gru_model_forward.1} parent=1 // pred_check_branch
      %19 = sbr.rel (0) target = $region13
    $region12: #{gru_model_forward.1} parent=1 // pred_region
      _
    $region13: #{gru_model_forward.1} parent=1 // pred_fallthru
      _
    // Predicated region
    $region14: #{gru_model_forward.1} parent=1 // pred_check
      _
    $region15: #{gru_model_forward.1} parent=1 // pred_check_branch
      %21 = sbr.rel (0) target = $region17
    $region16: #{gru_model_forward.1} parent=1 // pred_region
      _
    $region17: #{gru_model_forward.1} parent=1 // pred_fallthru
      _
    // Predicated region
    $region18: #{gru_model_forward.1} parent=1 // pred_check
      _
    $region19: #{gru_model_forward.1} parent=1 // pred_check_branch
      %23 = sbr.rel (0) target = $region21
    $region20: #{gru_model_forward.1} parent=1 // pred_region
      _
    $region21: #{gru_model_forward.1} parent=1 // pred_fallthru
      _
    // Predicated region
    $region22: #{gru_model_forward.1} parent=1 // pred_check
      _
    $region23: #{gru_model_forward.1} parent=1 // pred_check_branch
      %25 = sbr.rel (0) target = $region25
    $region24: #{gru_model_forward.1} parent=1 // pred_region
      _
    $region25: #{gru_model_forward.1} parent=1 // pred_fallthru
      _
    // Predicated region
    $region26: #{gru_model_forward.1} parent=1 // pred_check
      _
    $region27: #{gru_model_forward.1} parent=1 // pred_check_branch
      %27 = sbr.rel (0) target = $region29
    $region28: #{gru_model_forward.1} parent=1 // pred_region
      _
    $region29: #{gru_model_forward.1} parent=1 // pred_fallthru
      _
    // Predicated region
    $region30: #{gru_model_forward.1} parent=1 // pred_check
      _
    $region31: #{gru_model_forward.1} parent=1 // pred_check_branch
      %29 = sbr.rel (0) target = $region33
    $region32: #{gru_model_forward.1} parent=1 // pred_region
      _
    $region33: #{gru_model_forward.1} parent=1 // pred_fallthru
      _
    %v30 = vld [vmem:[%s0] sm:$0xff]
    %v31 = vld [vmem:[%s0 + $0x8] sm:$0xff]
    %v32 = vld [vmem:[%s2] sm:$0xf]
    %v33 = vld [vmem:[%s4] sm:$0x1]
    %v35 = vlaneseq
    %v36 = vshrl.u32 %v35, 7
    %v37 = vsub.s32 0, %v36
    %v38 = vrot.slane %v33, %v37
    %vm40 = vcmask 31744
    %v42 = vsel %vm40, %v30, 0
    %v45 = vsel %vm40, %v31, 0
    %vm47 = vcmask 1043456
    %v49 = vsel %vm47, %v32, 0
    %51 = vmatprep.subr.mxu0 0.0
    %52 = vmatpush1.msra.mxu0 %v49
    %53 = vmatprep.subr.mxu0 0.0
    %54 = vmatpush1.msra.mxu0 0.0
    %55 = vmatprep.subr.mxu0 0.0
    %56 = vmatpush1.msra.mxu0 0.0
    %57 = vmatprep.subr.mxu0 0.0
    %58 = vmatpush1.msra.mxu0 0.0
    %59 = vmatprep.subr.mxu0 0.0
    %60 = vmatpush1.msra.mxu0 0.0
    %61 = vmatprep.subr.mxu0 0.0
    %62 = vmatpush1.msra.mxu0 0.0
    %63 = vmatprep.subr.mxu0 0.0
    %64 = vmatpush1.msra.mxu0 0.0
    %65 = vmatprep.subr.mxu0 0.0
    %66 = vmatpush1.msra.mxu0 0.0
    %67 = vmatprep.subr.mxu0 0.0
    %68 = vmatpush1.msra.mxu0 0.0
    %69 = vmatprep.subr.mxu0 0.0
    %70 = vmatpush1.msra.mxu0 0.0
    %71 = vmatprep.subr.mxu0 0.0
    %72 = vmatpush1.msra.mxu0 0.0
    %73 = vmatprep.subr.mxu0 0.0
    %74 = vmatpush1.msra.mxu0 0.0
    %75 = vmatprep.subr.mxu0 0.0
    %76 = vmatpush1.msra.mxu0 0.0
    %77 = vmatprep.subr.mxu0 0.0
    %78 = vmatpush1.msra.mxu0 0.0
    %79 = vmatprep.subr.mxu0 0.0
    %80 = vmatpush1.msra.mxu0 0.0
    %81 = vmatprep.subr.mxu0 0.0
    %82 = vmatpush1.msra.mxu0 0.0
    %83 = vmatprep.subr.mxu0 0.0
    %84 = vmatpush1.msra.mxu0 0.0
    %85 = vmatprep.subr.mxu0 0.0
    %86 = vmatpush1.msra.mxu0 0.0
    %87 = vmatprep.subr.mxu0 0.0
    %88 = vmatpush1.msra.mxu0 0.0
    %89 = vmatprep.subr.mxu0 0.0
    %90 = vmatpush1.msra.mxu0 0.0
    %91 = vmatprep.subr.mxu0 0.0
    %92 = vmatpush1.msra.mxu0 0.0
    %93 = vmatprep.subr.mxu0 0.0
    %94 = vmatpush1.msra.mxu0 0.0
    %95 = vmatprep.subr.mxu0 0.0
    %96 = vmatpush1.msra.mxu0 0.0
    %97 = vmatprep.subr.mxu0 0.0
    %98 = vmatpush1.msra.mxu0 0.0
    %99 = vmatprep.subr.mxu0 0.0
    %100 = vmatpush1.msra.mxu0 0.0
    %101 = vmatprep.subr.mxu0 0.0
    %102 = vmatpush1.msra.mxu0 0.0
    %103 = vmatprep.subr.mxu0 0.0
    %104 = vmatpush1.msra.mxu0 0.0
    %105 = vmatprep.subr.mxu0 0.0
    %106 = vmatpush1.msra.mxu0 0.0
    %107 = vmatprep.subr.mxu0 0.0
    %108 = vmatpush1.msra.mxu0 0.0
    %109 = vmatprep.subr.mxu0 0.0
    %110 = vmatpush1.msra.mxu0 0.0
    %111 = vmatprep.subr.mxu0 0.0
    %112 = vmatpush1.msra.mxu0 0.0
    %113 = vmatprep.subr.mxu0 0.0
    %114 = vmatpush1.msra.mxu0 0.0
    %115 = vmatprep.mubr.f32.mxu0 0.0
    %116 = vmatmul.mubr.f32.gmra.mrb[0].mxu0 %v42
    %v117 = vpop.f32.mrb[0].mxu0
    %v118 = vadd.f32 %v38, %v117
    %v119 = vpop.f32.mrb[0].mxu0
    %120 = vmatprep.mubr.f32.mxu0 0.0
    %121 = vmatmul.mubr.f32.gmra.mrb[0].mxu0 %v45
    %v122 = vpop.f32.mrb[0].mxu0
    %v123 = vadd.f32 %v38, %v122
    %v124 = vpop.f32.mrb[0].mxu0
    %125 = vdwg.mxu0
    %v126 = vld [vmem:[%s1] sm:$0x3]
    %v127 = vld [vmem:[%s3] sm:$0xff]
    %v128 = vld [vmem:[%s3 + $0x8] sm:$0xff]
    %v129 = vld [vmem:[%s3 + $0x10] sm:$0xff]
    %v130 = vld [vmem:[%s3 + $0x18] sm:$0xff]
    %v131 = vld [vmem:[%s5] sm:$0x1]
    %vm132 = vcmask 261120
    %v134 = vsel %vm132, %v126, 0
    %136 = vmatprep.subr.mxu0 0.0
    %137 = vmatpush1.msra.mxu0 %v127
    %138 = vmatprep.subr.mxu0 0.0
    %139 = vmatpush1.msra.mxu0 %v128
    %140 = vmatprep.subr.mxu0 0.0
    %141 = vmatpush1.msra.mxu0 %v129
    %142 = vmatprep.subr.mxu0 0.0
    %143 = vmatpush1.msra.mxu0 %v130
    %144 = vmatprep.subr.mxu0 0.0
    %145 = vmatpush1.msra.mxu0 0.0
    %146 = vmatprep.subr.mxu0 0.0
    %147 = vmatpush1.msra.mxu0 0.0
    %148 = vmatprep.subr.mxu0 0.0
    %149 = vmatpush1.msra.mxu0 0.0
    %150 = vmatprep.subr.mxu0 0.0
    %151 = vmatpush1.msra.mxu0 0.0
    %152 = vmatprep.subr.mxu0 0.0
    %153 = vmatpush1.msra.mxu0 0.0
    %154 = vmatprep.subr.mxu0 0.0
    %155 = vmatpush1.msra.mxu0 0.0
    %156 = vmatprep.subr.mxu0 0.0
    %157 = vmatpush1.msra.mxu0 0.0
    %158 = vmatprep.subr.mxu0 0.0
    %159 = vmatpush1.msra.mxu0 0.0
    %160 = vmatprep.subr.mxu0 0.0
    %161 = vmatpush1.msra.mxu0 0.0
    %162 = vmatprep.subr.mxu0 0.0
    %163 = vmatpush1.msra.mxu0 0.0
    %164 = vmatprep.subr.mxu0 0.0
    %165 = vmatpush1.msra.mxu0 0.0
    %166 = vmatprep.subr.mxu0 0.0
    %167 = vmatpush1.msra.mxu0 0.0
    %168 = vmatprep.subr.mxu0 0.0
    %169 = vmatpush1.msra.mxu0 0.0
    %170 = vmatprep.subr.mxu0 0.0
    %171 = vmatpush1.msra.mxu0 0.0
    %172 = vmatprep.subr.mxu0 0.0
    %173 = vmatpush1.msra.mxu0 0.0
    %174 = vmatprep.subr.mxu0 0.0
    %175 = vmatpush1.msra.mxu0 0.0
    %176 = vmatprep.subr.mxu0 0.0
    %177 = vmatpush1.msra.mxu0 0.0
    %178 = vmatprep.subr.mxu0 0.0
    %179 = vmatpush1.msra.mxu0 0.0
    %180 = vmatprep.subr.mxu0 0.0
    %181 = vmatpush1.msra.mxu0 0.0
    %182 = vmatprep.subr.mxu0 0.0
    %183 = vmatpush1.msra.mxu0 0.0
    %184 = vmatprep.subr.mxu0 0.0
    %185 = vmatpush1.msra.mxu0 0.0
    %186 = vmatprep.subr.mxu0 0.0
    %187 = vmatpush1.msra.mxu0 0.0
    %188 = vmatprep.subr.mxu0 0.0
    %189 = vmatpush1.msra.mxu0 0.0
    %190 = vmatprep.subr.mxu0 0.0
    %191 = vmatpush1.msra.mxu0 0.0
    %192 = vmatprep.subr.mxu0 0.0
    %193 = vmatpush1.msra.mxu0 0.0
    %194 = vmatprep.subr.mxu0 0.0
    %195 = vmatpush1.msra.mxu0 0.0
    %196 = vmatprep.subr.mxu0 0.0
    %197 = vmatpush1.msra.mxu0 0.0
    %198 = vmatprep.subr.mxu0 0.0
    %199 = vmatpush1.msra.mxu0 0.0
    %200 = vmatprep.mubr.f32.mxu0 0.0
    %201 = vmatmul.mubr.f32.gmra.mrb[0].mxu0 %v134
    %v202 = vpop.f32.mrb[0].mxu0
    %v203 = vadd.f32 0.0, %v202
    %v204 = vpop.f32.mrb[0].mxu0
    %205 = vdwg.mxu0
    %v206 = vadd.f32 %v118, %v203
    %v207 = vxor.u32 %v206, 2147483648
    %v208 = vmul.f32 %v207, 1.442695
    %v209 = vpow.pop %v208
    %v210 = vadd.f32 %v209, 1.0
    %v211 = vrcp.pop %v210
    %v212 = vmul.f32 1.0, %v211
    %v214 = vlaneseq
    %v215 = vshrl.u32 %v214, 7
    %v216 = vsub.s32 0, %v215
    %v217 = vrot.slane %v131, %v216
    %218 = vrot.lane.b32.xlu0 %v217, 64
    %v219 = vpop.permute.xlu0 %218
    %v221 = vadd.f32 %v203, %v219
    %223 = vrot.lane.b32.xlu0 %v221, 64
    %v224 = vpop.permute.xlu0 %223
    %v226 = vmul.f32 %v212, %v224
    %228 = vrot.lane.b32.xlu0 %v226, 64
    %v229 = vpop.permute.xlu0 %228
    %v231 = vadd.f32 %v118, %v229
    %v232 = vtanh.pop %v231
    %v233 = vsub.f32 1.0, %v212
    %235 = vrot.lane.b32.xlu0 %v232, 96
    %v236 = vpop.permute.xlu0 %235
    %v238 = vmul.f32 %v233, %v236
    %239 = vrot.lane.b32.xlu0 %v126, 32
    %v240 = vpop.permute.xlu0 %239
    %v242 = vmul.f32 %v212, %v240
    %v243 = vadd.f32 %v238, %v242
    %245 = vrot.lane.b32.xlu0 %v243, 96
    %v246 = vpop.permute.xlu0 %245
    %v247 = vsel %vm132, %v246, 0
    %249 = vmatprep.subr.mxu0 0.0
    %250 = vmatpush1.msra.mxu0 %v127
    %251 = vmatprep.subr.mxu0 0.0
    %252 = vmatpush1.msra.mxu0 %v128
    %253 = vmatprep.subr.mxu0 0.0
    %254 = vmatpush1.msra.mxu0 %v129
    %255 = vmatprep.subr.mxu0 0.0
    %256 = vmatpush1.msra.mxu0 %v130
    %257 = vmatprep.subr.mxu0 0.0
    %258 = vmatpush1.msra.mxu0 0.0
    %259 = vmatprep.subr.mxu0 0.0
    %260 = vmatpush1.msra.mxu0 0.0
    %261 = vmatprep.subr.mxu0 0.0
    %262 = vmatpush1.msra.mxu0 0.0
    %263 = vmatprep.subr.mxu0 0.0
    %264 = vmatpush1.msra.mxu0 0.0
    %265 = vmatprep.subr.mxu0 0.0
    %266 = vmatpush1.msra.mxu0 0.0
    %267 = vmatprep.subr.mxu0 0.0
    %268 = vmatpush1.msra.mxu0 0.0
    %269 = vmatprep.subr.mxu0 0.0
    %270 = vmatpush1.msra.mxu0 0.0
    %271 = vmatprep.subr.mxu0 0.0
    %272 = vmatpush1.msra.mxu0 0.0
    %273 = vmatprep.subr.mxu0 0.0
    %274 = vmatpush1.msra.mxu0 0.0
    %275 = vmatprep.subr.mxu0 0.0
    %276 = vmatpush1.msra.mxu0 0.0
    %277 = vmatprep.subr.mxu0 0.0
    %278 = vmatpush1.msra.mxu0 0.0
    %279 = vmatprep.subr.mxu0 0.0
    %280 = vmatpush1.msra.mxu0 0.0
    %281 = vmatprep.subr.mxu0 0.0
    %282 = vmatpush1.msra.mxu0 0.0
    %283 = vmatprep.subr.mxu0 0.0
    %284 = vmatpush1.msra.mxu0 0.0
    %285 = vmatprep.subr.mxu0 0.0
    %286 = vmatpush1.msra.mxu0 0.0
    %287 = vmatprep.subr.mxu0 0.0
    %288 = vmatpush1.msra.mxu0 0.0
    %289 = vmatprep.subr.mxu0 0.0
    %290 = vmatpush1.msra.mxu0 0.0
    %291 = vmatprep.subr.mxu0 0.0
    %292 = vmatpush1.msra.mxu0 0.0
    %293 = vmatprep.subr.mxu0 0.0
    %294 = vmatpush1.msra.mxu0 0.0
    %295 = vmatprep.subr.mxu0 0.0
    %296 = vmatpush1.msra.mxu0 0.0
    %297 = vmatprep.subr.mxu0 0.0
    %298 = vmatpush1.msra.mxu0 0.0
    %299 = vmatprep.subr.mxu0 0.0
    %300 = vmatpush1.msra.mxu0 0.0
    %301 = vmatprep.subr.mxu0 0.0
    %302 = vmatpush1.msra.mxu0 0.0
    %303 = vmatprep.subr.mxu0 0.0
    %304 = vmatpush1.msra.mxu0 0.0
    %305 = vmatprep.subr.mxu0 0.0
    %306 = vmatpush1.msra.mxu0 0.0
    %307 = vmatprep.subr.mxu0 0.0
    %308 = vmatpush1.msra.mxu0 0.0
    %309 = vmatprep.subr.mxu0 0.0
    %310 = vmatpush1.msra.mxu0 0.0
    %311 = vmatprep.subr.mxu0 0.0
    %312 = vmatpush1.msra.mxu0 0.0
    %313 = vmatprep.mubr.f32.mxu0 0.0
    %314 = vmatmul.mubr.f32.gmra.mrb[0].mxu0 %v247
    %v315 = vpop.f32.mrb[0].mxu0
    %v316 = vadd.f32 0.0, %v315
    %v317 = vpop.f32.mrb[0].mxu0
    %318 = vdwg.mxu0
    %v320 = vrot.slane %v316, 6
    %v322 = vadd.f32 %v118, %v320
    %v323 = vxor.u32 %v322, 2147483648
    %v324 = vmul.f32 %v323, 1.442695
    %v325 = vpow.pop %v324
    %v326 = vadd.f32 %v325, 1.0
    %v327 = vrcp.pop %v326
    %v328 = vmul.f32 1.0, %v327
    %v329 = vadd.f32 %v316, %v219
    %v331 = vrot.slane %v329, 6
    %332 = vrot.lane.b32.xlu0 %v331, 64
    %v333 = vpop.permute.xlu0 %332
    %v335 = vmul.f32 %v328, %v333
    %337 = vrot.lane.b32.xlu0 %v335, 64
    %v338 = vpop.permute.xlu0 %337
    %v340 = vadd.f32 %v118, %v338
    %v341 = vtanh.pop %v340
    %v342 = vsub.f32 1.0, %v328
    %344 = vrot.lane.b32.xlu0 %v341, 96
    %v345 = vpop.permute.xlu0 %344
    %v347 = vmul.f32 %v342, %v345
    %v348 = vrot.slane %v243, 6
    %v350 = vmul.f32 %v328, %v348
    %v351 = vadd.f32 %v347, %v350
    %v353 = vrot.slane %v351, 2
    %354 = vrot.lane.b32.xlu0 %v353, 96
    %v355 = vpop.permute.xlu0 %354
    %v356 = vsel %vm132, %v355, 0
    %358 = vmatprep.subr.mxu0 0.0
    %359 = vmatpush1.msra.mxu0 %v127
    %360 = vmatprep.subr.mxu0 0.0
    %361 = vmatpush1.msra.mxu0 %v128
    %362 = vmatprep.subr.mxu0 0.0
    %363 = vmatpush1.msra.mxu0 %v129
    %364 = vmatprep.subr.mxu0 0.0
    %365 = vmatpush1.msra.mxu0 %v130
    %366 = vmatprep.subr.mxu0 0.0
    %367 = vmatpush1.msra.mxu0 0.0
    %368 = vmatprep.subr.mxu0 0.0
    %369 = vmatpush1.msra.mxu0 0.0
    %370 = vmatprep.subr.mxu0 0.0
    %371 = vmatpush1.msra.mxu0 0.0
    %372 = vmatprep.subr.mxu0 0.0
    %373 = vmatpush1.msra.mxu0 0.0
    %374 = vmatprep.subr.mxu0 0.0
    %375 = vmatpush1.msra.mxu0 0.0
    %376 = vmatprep.subr.mxu0 0.0
    %377 = vmatpush1.msra.mxu0 0.0
    %378 = vmatprep.subr.mxu0 0.0
    %379 = vmatpush1.msra.mxu0 0.0
    %380 = vmatprep.subr.mxu0 0.0
    %381 = vmatpush1.msra.mxu0 0.0
    %382 = vmatprep.subr.mxu0 0.0
    %383 = vmatpush1.msra.mxu0 0.0
    %384 = vmatprep.subr.mxu0 0.0
    %385 = vmatpush1.msra.mxu0 0.0
    %386 = vmatprep.subr.mxu0 0.0
    %387 = vmatpush1.msra.mxu0 0.0
    %388 = vmatprep.subr.mxu0 0.0
    %389 = vmatpush1.msra.mxu0 0.0
    %390 = vmatprep.subr.mxu0 0.0
    %391 = vmatpush1.msra.mxu0 0.0
    %392 = vmatprep.subr.mxu0 0.0
    %393 = vmatpush1.msra.mxu0 0.0
    %394 = vmatprep.subr.mxu0 0.0
    %395 = vmatpush1.msra.mxu0 0.0
    %396 = vmatprep.subr.mxu0 0.0
    %397 = vmatpush1.msra.mxu0 0.0
    %398 = vmatprep.subr.mxu0 0.0
    %399 = vmatpush1.msra.mxu0 0.0
    %400 = vmatprep.subr.mxu0 0.0
    %401 = vmatpush1.msra.mxu0 0.0
    %402 = vmatprep.subr.mxu0 0.0
    %403 = vmatpush1.msra.mxu0 0.0
    %404 = vmatprep.subr.mxu0 0.0
    %405 = vmatpush1.msra.mxu0 0.0
    %406 = vmatprep.subr.mxu0 0.0
    %407 = vmatpush1.msra.mxu0 0.0
    %408 = vmatprep.subr.mxu0 0.0
    %409 = vmatpush1.msra.mxu0 0.0
    %410 = vmatprep.subr.mxu0 0.0
    %411 = vmatpush1.msra.mxu0 0.0
    %412 = vmatprep.subr.mxu0 0.0
    %413 = vmatpush1.msra.mxu0 0.0
    %414 = vmatprep.subr.mxu0 0.0
    %415 = vmatpush1.msra.mxu0 0.0
    %416 = vmatprep.subr.mxu0 0.0
    %417 = vmatpush1.msra.mxu0 0.0
    %418 = vmatprep.subr.mxu0 0.0
    %419 = vmatpush1.msra.mxu0 0.0
    %420 = vmatprep.subr.mxu0 0.0
    %421 = vmatpush1.msra.mxu0 0.0
    %422 = vmatprep.mubr.f32.mxu0 0.0
    %423 = vmatmul.mubr.f32.gmra.mrb[0].mxu0 %v356
    %v424 = vpop.f32.mrb[0].mxu0
    %v425 = vadd.f32 0.0, %v424
    %v426 = vpop.f32.mrb[0].mxu0
    %427 = vdwg.mxu0
    %v429 = vrot.slane %v425, 4
    %v431 = vadd.f32 %v118, %v429
    %v432 = vxor.u32 %v431, 2147483648
    %v433 = vmul.f32 %v432, 1.442695
    %v434 = vpow.pop %v433
    %v435 = vadd.f32 %v434, 1.0
    %v436 = vrcp.pop %v435
    %v437 = vmul.f32 1.0, %v436
    %v438 = vadd.f32 %v425, %v219
    %v440 = vrot.slane %v438, 4
    %441 = vrot.lane.b32.xlu0 %v440, 64
    %v442 = vpop.permute.xlu0 %441
    %v444 = vmul.f32 %v437, %v442
    %446 = vrot.lane.b32.xlu0 %v444, 64
    %v447 = vpop.permute.xlu0 %446
    %v449 = vadd.f32 %v118, %v447
    %v450 = vtanh.pop %v449
    %v451 = vsub.f32 1.0, %v437
    %453 = vrot.lane.b32.xlu0 %v450, 96
    %v454 = vpop.permute.xlu0 %453
    %v456 = vmul.f32 %v451, %v454
    %v457 = vrot.slane %v351, 6
    %v459 = vmul.f32 %v437, %v457
    %v460 = vadd.f32 %v456, %v459
    %v462 = vrot.slane %v460, 4
    %463 = vrot.lane.b32.xlu0 %v462, 96
    %v464 = vpop.permute.xlu0 %463
    %v465 = vsel %vm132, %v464, 0
    %467 = vmatprep.subr.mxu0 0.0
    %468 = vmatpush1.msra.mxu0 %v127
    %469 = vmatprep.subr.mxu0 0.0
    %470 = vmatpush1.msra.mxu0 %v128
    %471 = vmatprep.subr.mxu0 0.0
    %472 = vmatpush1.msra.mxu0 %v129
    %473 = vmatprep.subr.mxu0 0.0
    %474 = vmatpush1.msra.mxu0 %v130
    %475 = vmatprep.subr.mxu0 0.0
    %476 = vmatpush1.msra.mxu0 0.0
    %477 = vmatprep.subr.mxu0 0.0
    %478 = vmatpush1.msra.mxu0 0.0
    %479 = vmatprep.subr.mxu0 0.0
    %480 = vmatpush1.msra.mxu0 0.0
    %481 = vmatprep.subr.mxu0 0.0
    %482 = vmatpush1.msra.mxu0 0.0
    %483 = vmatprep.subr.mxu0 0.0
    %484 = vmatpush1.msra.mxu0 0.0
    %485 = vmatprep.subr.mxu0 0.0
    %486 = vmatpush1.msra.mxu0 0.0
    %487 = vmatprep.subr.mxu0 0.0
    %488 = vmatpush1.msra.mxu0 0.0
    %489 = vmatprep.subr.mxu0 0.0
    %490 = vmatpush1.msra.mxu0 0.0
    %491 = vmatprep.subr.mxu0 0.0
    %492 = vmatpush1.msra.mxu0 0.0
    %493 = vmatprep.subr.mxu0 0.0
    %494 = vmatpush1.msra.mxu0 0.0
    %495 = vmatprep.subr.mxu0 0.0
    %496 = vmatpush1.msra.mxu0 0.0
    %497 = vmatprep.subr.mxu0 0.0
    %498 = vmatpush1.msra.mxu0 0.0
    %499 = vmatprep.subr.mxu0 0.0
    %500 = vmatpush1.msra.mxu0 0.0
    %501 = vmatprep.subr.mxu0 0.0
    %502 = vmatpush1.msra.mxu0 0.0
    %503 = vmatprep.subr.mxu0 0.0
    %504 = vmatpush1.msra.mxu0 0.0
    %505 = vmatprep.subr.mxu0 0.0
    %506 = vmatpush1.msra.mxu0 0.0
    %507 = vmatprep.subr.mxu0 0.0
    %508 = vmatpush1.msra.mxu0 0.0
    %509 = vmatprep.subr.mxu0 0.0
    %510 = vmatpush1.msra.mxu0 0.0
    %511 = vmatprep.subr.mxu0 0.0
    %512 = vmatpush1.msra.mxu0 0.0
    %513 = vmatprep.subr.mxu0 0.0
    %514 = vmatpush1.msra.mxu0 0.0
    %515 = vmatprep.subr.mxu0 0.0
    %516 = vmatpush1.msra.mxu0 0.0
    %517 = vmatprep.subr.mxu0 0.0
    %518 = vmatpush1.msra.mxu0 0.0
    %519 = vmatprep.subr.mxu0 0.0
    %520 = vmatpush1.msra.mxu0 0.0
    %521 = vmatprep.subr.mxu0 0.0
    %522 = vmatpush1.msra.mxu0 0.0
    %523 = vmatprep.subr.mxu0 0.0
    %524 = vmatpush1.msra.mxu0 0.0
    %525 = vmatprep.subr.mxu0 0.0
    %526 = vmatpush1.msra.mxu0 0.0
    %527 = vmatprep.subr.mxu0 0.0
    %528 = vmatpush1.msra.mxu0 0.0
    %529 = vmatprep.subr.mxu0 0.0
    %530 = vmatpush1.msra.mxu0 0.0
    %531 = vmatprep.mubr.f32.mxu0 0.0
    %532 = vmatmul.mubr.f32.gmra.mrb[0].mxu0 %v465
    %v533 = vpop.f32.mrb[0].mxu0
    %v534 = vadd.f32 0.0, %v533
    %v535 = vpop.f32.mrb[0].mxu0
    %536 = vdwg.mxu0
    %v538 = vrot.slane %v534, 2
    %v540 = vadd.f32 %v118, %v538
    %v541 = vxor.u32 %v540, 2147483648
    %v542 = vmul.f32 %v541, 1.442695
    %v543 = vpow.pop %v542
    %v544 = vadd.f32 %v543, 1.0
    %v545 = vrcp.pop %v544
    %v546 = vmul.f32 1.0, %v545
    %v547 = vadd.f32 %v534, %v219
    %v549 = vrot.slane %v547, 2
    %550 = vrot.lane.b32.xlu0 %v549, 64
    %v551 = vpop.permute.xlu0 %550
    %v553 = vmul.f32 %v546, %v551
    %555 = vrot.lane.b32.xlu0 %v553, 64
    %v556 = vpop.permute.xlu0 %555
    %v558 = vadd.f32 %v118, %v556
    %v559 = vtanh.pop %v558
    %v560 = vsub.f32 1.0, %v546
    %562 = vrot.lane.b32.xlu0 %v559, 96
    %v563 = vpop.permute.xlu0 %562
    %v565 = vmul.f32 %v560, %v563
    %v566 = vrot.slane %v460, 6
    %v568 = vmul.f32 %v546, %v566
    %v569 = vadd.f32 %v565, %v568
    %v571 = vrot.slane %v569, 6
    %572 = vrot.lane.b32.xlu0 %v571, 96
    %v573 = vpop.permute.xlu0 %572
    %v574 = vsel %vm132, %v573, 0
    %576 = vmatprep.subr.mxu0 0.0
    %577 = vmatpush1.msra.mxu0 %v127
    %578 = vmatprep.subr.mxu0 0.0
    %579 = vmatpush1.msra.mxu0 %v128
    %580 = vmatprep.subr.mxu0 0.0
    %581 = vmatpush1.msra.mxu0 %v129
    %582 = vmatprep.subr.mxu0 0.0
    %583 = vmatpush1.msra.mxu0 %v130
    %584 = vmatprep.subr.mxu0 0.0
    %585 = vmatpush1.msra.mxu0 0.0
    %586 = vmatprep.subr.mxu0 0.0
    %587 = vmatpush1.msra.mxu0 0.0
    %588 = vmatprep.subr.mxu0 0.0
    %589 = vmatpush1.msra.mxu0 0.0
    %590 = vmatprep.subr.mxu0 0.0
    %591 = vmatpush1.msra.mxu0 0.0
    %592 = vmatprep.subr.mxu0 0.0
    %593 = vmatpush1.msra.mxu0 0.0
    %594 = vmatprep.subr.mxu0 0.0
    %595 = vmatpush1.msra.mxu0 0.0
    %596 = vmatprep.subr.mxu0 0.0
    %597 = vmatpush1.msra.mxu0 0.0
    %598 = vmatprep.subr.mxu0 0.0
    %599 = vmatpush1.msra.mxu0 0.0
    %600 = vmatprep.subr.mxu0 0.0
    %601 = vmatpush1.msra.mxu0 0.0
    %602 = vmatprep.subr.mxu0 0.0
    %603 = vmatpush1.msra.mxu0 0.0
    %604 = vmatprep.subr.mxu0 0.0
    %605 = vmatpush1.msra.mxu0 0.0
    %606 = vmatprep.subr.mxu0 0.0
    %607 = vmatpush1.msra.mxu0 0.0
    %608 = vmatprep.subr.mxu0 0.0
    %609 = vmatpush1.msra.mxu0 0.0
    %610 = vmatprep.subr.mxu0 0.0
    %611 = vmatpush1.msra.mxu0 0.0
    %612 = vmatprep.subr.mxu0 0.0
    %613 = vmatpush1.msra.mxu0 0.0
    %614 = vmatprep.subr.mxu0 0.0
    %615 = vmatpush1.msra.mxu0 0.0
    %616 = vmatprep.subr.mxu0 0.0
    %617 = vmatpush1.msra.mxu0 0.0
    %618 = vmatprep.subr.mxu0 0.0
    %619 = vmatpush1.msra.mxu0 0.0
    %620 = vmatprep.subr.mxu0 0.0
    %621 = vmatpush1.msra.mxu0 0.0
    %622 = vmatprep.subr.mxu0 0.0
    %623 = vmatpush1.msra.mxu0 0.0
    %624 = vmatprep.subr.mxu0 0.0
    %625 = vmatpush1.msra.mxu0 0.0
    %626 = vmatprep.subr.mxu0 0.0
    %627 = vmatpush1.msra.mxu0 0.0
    %628 = vmatprep.subr.mxu0 0.0
    %629 = vmatpush1.msra.mxu0 0.0
    %630 = vmatprep.subr.mxu0 0.0
    %631 = vmatpush1.msra.mxu0 0.0
    %632 = vmatprep.subr.mxu0 0.0
    %633 = vmatpush1.msra.mxu0 0.0
    %634 = vmatprep.subr.mxu0 0.0
    %635 = vmatpush1.msra.mxu0 0.0
    %636 = vmatprep.subr.mxu0 0.0
    %637 = vmatpush1.msra.mxu0 0.0
    %638 = vmatprep.subr.mxu0 0.0
    %639 = vmatpush1.msra.mxu0 0.0
    %640 = vmatprep.mubr.f32.mxu0 0.0
    %641 = vmatmul.mubr.f32.gmra.mrb[0].mxu0 %v574
    %v642 = vpop.f32.mrb[0].mxu0
    %v643 = vadd.f32 0.0, %v642
    %v644 = vpop.f32.mrb[0].mxu0
    %645 = vdwg.mxu0
    %v646 = vadd.f32 %v123, %v643
    %v647 = vxor.u32 %v646, 2147483648
    %v648 = vmul.f32 %v647, 1.442695
    %v649 = vpow.pop %v648
    %v650 = vadd.f32 %v649, 1.0
    %v651 = vrcp.pop %v650
    %v652 = vmul.f32 1.0, %v651
    %v653 = vadd.f32 %v643, %v219
    %655 = vrot.lane.b32.xlu0 %v653, 64
    %v656 = vpop.permute.xlu0 %655
    %v658 = vmul.f32 %v652, %v656
    %660 = vrot.lane.b32.xlu0 %v658, 64
    %v661 = vpop.permute.xlu0 %660
    %v663 = vadd.f32 %v123, %v661
    %v664 = vtanh.pop %v663
    %v665 = vsub.f32 1.0, %v652
    %667 = vrot.lane.b32.xlu0 %v664, 96
    %v668 = vpop.permute.xlu0 %667
    %v670 = vmul.f32 %v665, %v668
    %v672 = vmul.f32 %v652, %v571
    %v673 = vadd.f32 %v670, %v672
    %675 = vrot.lane.b32.xlu0 %v673, 96
    %v676 = vpop.permute.xlu0 %675
    %v677 = vsel %vm132, %v676, 0
    %679 = vmatprep.subr.mxu0 0.0
    %680 = vmatpush1.msra.mxu0 %v127
    %681 = vmatprep.subr.mxu0 0.0
    %682 = vmatpush1.msra.mxu0 %v128
    %683 = vmatprep.subr.mxu0 0.0
    %684 = vmatpush1.msra.mxu0 %v129
    %685 = vmatprep.subr.mxu0 0.0
    %686 = vmatpush1.msra.mxu0 %v130
    %687 = vmatprep.subr.mxu0 0.0
    %688 = vmatpush1.msra.mxu0 0.0
    %689 = vmatprep.subr.mxu0 0.0
    %690 = vmatpush1.msra.mxu0 0.0
    %691 = vmatprep.subr.mxu0 0.0
    %692 = vmatpush1.msra.mxu0 0.0
    %693 = vmatprep.subr.mxu0 0.0
    %694 = vmatpush1.msra.mxu0 0.0
    %695 = vmatprep.subr.mxu0 0.0
    %696 = vmatpush1.msra.mxu0 0.0
    %697 = vmatprep.subr.mxu0 0.0
    %698 = vmatpush1.msra.mxu0 0.0
    %699 = vmatprep.subr.mxu0 0.0
    %700 = vmatpush1.msra.mxu0 0.0
    %701 = vmatprep.subr.mxu0 0.0
    %702 = vmatpush1.msra.mxu0 0.0
    %703 = vmatprep.subr.mxu0 0.0
    %704 = vmatpush1.msra.mxu0 0.0
    %705 = vmatprep.subr.mxu0 0.0
    %706 = vmatpush1.msra.mxu0 0.0
    %707 = vmatprep.subr.mxu0 0.0
    %708 = vmatpush1.msra.mxu0 0.0
    %709 = vmatprep.subr.mxu0 0.0
    %710 = vmatpush1.msra.mxu0 0.0
    %711 = vmatprep.subr.mxu0 0.0
    %712 = vmatpush1.msra.mxu0 0.0
    %713 = vmatprep.subr.mxu0 0.0
    %714 = vmatpush1.msra.mxu0 0.0
    %715 = vmatprep.subr.mxu0 0.0
    %716 = vmatpush1.msra.mxu0 0.0
    %717 = vmatprep.subr.mxu0 0.0
    %718 = vmatpush1.msra.mxu0 0.0
    %719 = vmatprep.subr.mxu0 0.0
    %720 = vmatpush1.msra.mxu0 0.0
    %721 = vmatprep.subr.mxu0 0.0
    %722 = vmatpush1.msra.mxu0 0.0
    %723 = vmatprep.subr.mxu0 0.0
    %724 = vmatpush1.msra.mxu0 0.0
    %725 = vmatprep.subr.mxu0 0.0
    %726 = vmatpush1.msra.mxu0 0.0
    %727 = vmatprep.subr.mxu0 0.0
    %728 = vmatpush1.msra.mxu0 0.0
    %729 = vmatprep.subr.mxu0 0.0
    %730 = vmatpush1.msra.mxu0 0.0
    %731 = vmatprep.subr.mxu0 0.0
    %732 = vmatpush1.msra.mxu0 0.0
    %733 = vmatprep.subr.mxu0 0.0
    %734 = vmatpush1.msra.mxu0 0.0
    %735 = vmatprep.subr.mxu0 0.0
    %736 = vmatpush1.msra.mxu0 0.0
    %737 = vmatprep.subr.mxu0 0.0
    %738 = vmatpush1.msra.mxu0 0.0
    %739 = vmatprep.subr.mxu0 0.0
    %740 = vmatpush1.msra.mxu0 0.0
    %741 = vmatprep.subr.mxu0 0.0
    %742 = vmatpush1.msra.mxu0 0.0
    %743 = vmatprep.mubr.f32.mxu0 0.0
    %744 = vmatmul.mubr.f32.gmra.mrb[0].mxu0 %v677
    %v745 = vpop.f32.mrb[0].mxu0
    %v746 = vadd.f32 0.0, %v745
    %v747 = vpop.f32.mrb[0].mxu0
    %748 = vdwg.mxu0
    %v750 = vrot.slane %v746, 6
    %v752 = vadd.f32 %v123, %v750
    %v753 = vxor.u32 %v752, 2147483648
    %v754 = vmul.f32 %v753, 1.442695
    %v755 = vpow.pop %v754
    %v756 = vadd.f32 %v755, 1.0
    %v757 = vrcp.pop %v756
    %v758 = vmul.f32 1.0, %v757
    %v759 = vadd.f32 %v746, %v219
    %v761 = vrot.slane %v759, 6
    %762 = vrot.lane.b32.xlu0 %v761, 64
    %v763 = vpop.permute.xlu0 %762
    %v765 = vmul.f32 %v758, %v763
    %767 = vrot.lane.b32.xlu0 %v765, 64
    %v768 = vpop.permute.xlu0 %767
    %v770 = vadd.f32 %v123, %v768
    %v771 = vtanh.pop %v770
    %v772 = vsub.f32 1.0, %v758
    %774 = vrot.lane.b32.xlu0 %v771, 96
    %v775 = vpop.permute.xlu0 %774
    %v777 = vmul.f32 %v772, %v775
    %v778 = vrot.slane %v673, 6
    %v780 = vmul.f32 %v758, %v778
    %v781 = vadd.f32 %v777, %v780
    %v783 = vrot.slane %v781, 2
    %784 = vrot.lane.b32.xlu0 %v783, 96
    %v785 = vpop.permute.xlu0 %784
    %v786 = vsel %vm132, %v785, 0
    %788 = vmatprep.subr.mxu0 0.0
    %789 = vmatpush1.msra.mxu0 %v127
    %790 = vmatprep.subr.mxu0 0.0
    %791 = vmatpush1.msra.mxu0 %v128
    %792 = vmatprep.subr.mxu0 0.0
    %793 = vmatpush1.msra.mxu0 %v129
    %794 = vmatprep.subr.mxu0 0.0
    %795 = vmatpush1.msra.mxu0 %v130
    %796 = vmatprep.subr.mxu0 0.0
    %797 = vmatpush1.msra.mxu0 0.0
    %798 = vmatprep.subr.mxu0 0.0
    %799 = vmatpush1.msra.mxu0 0.0
    %800 = vmatprep.subr.mxu0 0.0
    %801 = vmatpush1.msra.mxu0 0.0
    %802 = vmatprep.subr.mxu0 0.0
    %803 = vmatpush1.msra.mxu0 0.0
    %804 = vmatprep.subr.mxu0 0.0
    %805 = vmatpush1.msra.mxu0 0.0
    %806 = vmatprep.subr.mxu0 0.0
    %807 = vmatpush1.msra.mxu0 0.0
    %808 = vmatprep.subr.mxu0 0.0
    %809 = vmatpush1.msra.mxu0 0.0
    %810 = vmatprep.subr.mxu0 0.0
    %811 = vmatpush1.msra.mxu0 0.0
    %812 = vmatprep.subr.mxu0 0.0
    %813 = vmatpush1.msra.mxu0 0.0
    %814 = vmatprep.subr.mxu0 0.0
    %815 = vmatpush1.msra.mxu0 0.0
    %816 = vmatprep.subr.mxu0 0.0
    %817 = vmatpush1.msra.mxu0 0.0
    %818 = vmatprep.subr.mxu0 0.0
    %819 = vmatpush1.msra.mxu0 0.0
    %820 = vmatprep.subr.mxu0 0.0
    %821 = vmatpush1.msra.mxu0 0.0
    %822 = vmatprep.subr.mxu0 0.0
    %823 = vmatpush1.msra.mxu0 0.0
    %824 = vmatprep.subr.mxu0 0.0
    %825 = vmatpush1.msra.mxu0 0.0
    %826 = vmatprep.subr.mxu0 0.0
    %827 = vmatpush1.msra.mxu0 0.0
    %828 = vmatprep.subr.mxu0 0.0
    %829 = vmatpush1.msra.mxu0 0.0
    %830 = vmatprep.subr.mxu0 0.0
    %831 = vmatpush1.msra.mxu0 0.0
    %832 = vmatprep.subr.mxu0 0.0
    %833 = vmatpush1.msra.mxu0 0.0
    %834 = vmatprep.subr.mxu0 0.0
    %835 = vmatpush1.msra.mxu0 0.0
    %836 = vmatprep.subr.mxu0 0.0
    %837 = vmatpush1.msra.mxu0 0.0
    %838 = vmatprep.subr.mxu0 0.0
    %839 = vmatpush1.msra.mxu0 0.0
    %840 = vmatprep.subr.mxu0 0.0
    %841 = vmatpush1.msra.mxu0 0.0
    %842 = vmatprep.subr.mxu0 0.0
    %843 = vmatpush1.msra.mxu0 0.0
    %844 = vmatprep.subr.mxu0 0.0
    %845 = vmatpush1.msra.mxu0 0.0
    %846 = vmatprep.subr.mxu0 0.0
    %847 = vmatpush1.msra.mxu0 0.0
    %848 = vmatprep.subr.mxu0 0.0
    %849 = vmatpush1.msra.mxu0 0.0
    %850 = vmatprep.subr.mxu0 0.0
    %851 = vmatpush1.msra.mxu0 0.0
    %852 = vmatprep.mubr.f32.mxu0 0.0
    %853 = vmatmul.mubr.f32.gmra.mrb[0].mxu0 %v786
    %v854 = vpop.f32.mrb[0].mxu0
    %v855 = vadd.f32 0.0, %v854
    %v856 = vpop.f32.mrb[0].mxu0
    %857 = vdwg.mxu0
    %v859 = vrot.slane %v855, 4
    %v861 = vadd.f32 %v123, %v859
    %v862 = vxor.u32 %v861, 2147483648
    %v863 = vmul.f32 %v862, 1.442695
    %v864 = vpow.pop %v863
    %v865 = vadd.f32 %v864, 1.0
    %v866 = vrcp.pop %v865
    %v867 = vmul.f32 1.0, %v866
    %v868 = vadd.f32 %v855, %v219
    %v870 = vrot.slane %v868, 4
    %871 = vrot.lane.b32.xlu0 %v870, 64
    %v872 = vpop.permute.xlu0 %871
    %v874 = vmul.f32 %v867, %v872
    %876 = vrot.lane.b32.xlu0 %v874, 64
    %v877 = vpop.permute.xlu0 %876
    %v879 = vadd.f32 %v123, %v877
    %v880 = vtanh.pop %v879
    %v881 = vsub.f32 1.0, %v867
    %883 = vrot.lane.b32.xlu0 %v880, 96
    %v884 = vpop.permute.xlu0 %883
    %v886 = vmul.f32 %v881, %v884
    %v887 = vrot.slane %v781, 6
    %v889 = vmul.f32 %v867, %v887
    %v890 = vadd.f32 %v886, %v889
    %v892 = vrot.slane %v890, 4
    %893 = vrot.lane.b32.xlu0 %v892, 96
    %v894 = vpop.permute.xlu0 %893
    %v895 = vsel %vm132, %v894, 0
    %897 = vmatprep.subr.mxu0 0.0
    %898 = vmatpush1.msra.mxu0 %v127
    %899 = vmatprep.subr.mxu0 0.0
    %900 = vmatpush1.msra.mxu0 %v128
    %901 = vmatprep.subr.mxu0 0.0
    %902 = vmatpush1.msra.mxu0 %v129
    %903 = vmatprep.subr.mxu0 0.0
    %904 = vmatpush1.msra.mxu0 %v130
    %905 = vmatprep.subr.mxu0 0.0
    %906 = vmatpush1.msra.mxu0 0.0
    %907 = vmatprep.subr.mxu0 0.0
    %908 = vmatpush1.msra.mxu0 0.0
    %909 = vmatprep.subr.mxu0 0.0
    %910 = vmatpush1.msra.mxu0 0.0
    %911 = vmatprep.subr.mxu0 0.0
    %912 = vmatpush1.msra.mxu0 0.0
    %913 = vmatprep.subr.mxu0 0.0
    %914 = vmatpush1.msra.mxu0 0.0
    %915 = vmatprep.subr.mxu0 0.0
    %916 = vmatpush1.msra.mxu0 0.0
    %917 = vmatprep.subr.mxu0 0.0
    %918 = vmatpush1.msra.mxu0 0.0
    %919 = vmatprep.subr.mxu0 0.0
    %920 = vmatpush1.msra.mxu0 0.0
    %921 = vmatprep.subr.mxu0 0.0
    %922 = vmatpush1.msra.mxu0 0.0
    %923 = vmatprep.subr.mxu0 0.0
    %924 = vmatpush1.msra.mxu0 0.0
    %925 = vmatprep.subr.mxu0 0.0
    %926 = vmatpush1.msra.mxu0 0.0
    %927 = vmatprep.subr.mxu0 0.0
    %928 = vmatpush1.msra.mxu0 0.0
    %929 = vmatprep.subr.mxu0 0.0
    %930 = vmatpush1.msra.mxu0 0.0
    %931 = vmatprep.subr.mxu0 0.0
    %932 = vmatpush1.msra.mxu0 0.0
    %933 = vmatprep.subr.mxu0 0.0
    %934 = vmatpush1.msra.mxu0 0.0
    %935 = vmatprep.subr.mxu0 0.0
    %936 = vmatpush1.msra.mxu0 0.0
    %937 = vmatprep.subr.mxu0 0.0
    %938 = vmatpush1.msra.mxu0 0.0
    %939 = vmatprep.subr.mxu0 0.0
    %940 = vmatpush1.msra.mxu0 0.0
    %941 = vmatprep.subr.mxu0 0.0
    %942 = vmatpush1.msra.mxu0 0.0
    %943 = vmatprep.subr.mxu0 0.0
    %944 = vmatpush1.msra.mxu0 0.0
    %945 = vmatprep.subr.mxu0 0.0
    %946 = vmatpush1.msra.mxu0 0.0
    %947 = vmatprep.subr.mxu0 0.0
    %948 = vmatpush1.msra.mxu0 0.0
    %949 = vmatprep.subr.mxu0 0.0
    %950 = vmatpush1.msra.mxu0 0.0
    %951 = vmatprep.subr.mxu0 0.0
    %952 = vmatpush1.msra.mxu0 0.0
    %953 = vmatprep.subr.mxu0 0.0
    %954 = vmatpush1.msra.mxu0 0.0
    %955 = vmatprep.subr.mxu0 0.0
    %956 = vmatpush1.msra.mxu0 0.0
    %957 = vmatprep.subr.mxu0 0.0
    %958 = vmatpush1.msra.mxu0 0.0
    %959 = vmatprep.subr.mxu0 0.0
    %960 = vmatpush1.msra.mxu0 0.0
    %961 = vmatprep.mubr.f32.mxu0 0.0
    %962 = vmatmul.mubr.f32.gmra.mrb[0].mxu0 %v895
    %v963 = vpop.f32.mrb[0].mxu0
    %v964 = vadd.f32 0.0, %v963
    %v965 = vpop.f32.mrb[0].mxu0
    %966 = vdwg.mxu0
    %v968 = vrot.slane %v964, 2
    %v970 = vadd.f32 %v123, %v968
    %v971 = vxor.u32 %v970, 2147483648
    %v972 = vmul.f32 %v971, 1.442695
    %v973 = vpow.pop %v972
    %v974 = vadd.f32 %v973, 1.0
    %v975 = vrcp.pop %v974
    %v976 = vmul.f32 1.0, %v975
    %v977 = vadd.f32 %v964, %v219
    %v979 = vrot.slane %v977, 2
    %980 = vrot.lane.b32.xlu0 %v979, 64
    %v981 = vpop.permute.xlu0 %980
    %v983 = vmul.f32 %v976, %v981
    %985 = vrot.lane.b32.xlu0 %v983, 64
    %v986 = vpop.permute.xlu0 %985
    %v988 = vadd.f32 %v123, %v986
    %v989 = vtanh.pop %v988
    %v990 = vsub.f32 1.0, %v976
    %992 = vrot.lane.b32.xlu0 %v989, 96
    %v993 = vpop.permute.xlu0 %992
    %v995 = vmul.f32 %v990, %v993
    %v996 = vrot.slane %v890, 6
    %v998 = vmul.f32 %v976, %v996
    %v999 = vadd.f32 %v995, %v998
    %v1000 = vld [vmem:[%s6] sm:$0xff]
    %v1001 = vld [vmem:[%s6 + $0x8] sm:$0xff]
    %v1002 = vld [vmem:[%s6 + $0x10] sm:$0xff]
    %v1003 = vld [vmem:[%s6 + $0x18] sm:$0xff]
    %v1004 = vld [vmem:[%s7] sm:$0x1]
    %v1006 = vlaneseq
    %v1007 = vshrl.u32 %v1006, 7
    %v1008 = vsub.s32 0, %v1007
    %v1009 = vrot.slane %v1004, %v1008
    %v1012 = vrot.slane %v999, 6
    %1013 = vrot.lane.b32.xlu0 %v1012, 96
    %v1014 = vpop.permute.xlu0 %1013
    %v1015 = vsel %vm132, %v1014, 0
    %1017 = vmatprep.subr.mxu0 0.0
    %1018 = vmatpush1.msra.mxu0 %v1000
    %1019 = vmatprep.subr.mxu0 0.0
    %1020 = vmatpush1.msra.mxu0 %v1001
    %1021 = vmatprep.subr.mxu0 0.0
    %1022 = vmatpush1.msra.mxu0 %v1002
    %1023 = vmatprep.subr.mxu0 0.0
    %1024 = vmatpush1.msra.mxu0 %v1003
    %1025 = vmatprep.subr.mxu0 0.0
    %1026 = vmatpush1.msra.mxu0 0.0
    %1027 = vmatprep.subr.mxu0 0.0
    %1028 = vmatpush1.msra.mxu0 0.0
    %1029 = vmatprep.subr.mxu0 0.0
    %1030 = vmatpush1.msra.mxu0 0.0
    %1031 = vmatprep.subr.mxu0 0.0
    %1032 = vmatpush1.msra.mxu0 0.0
    %1033 = vmatprep.subr.mxu0 0.0
    %1034 = vmatpush1.msra.mxu0 0.0
    %1035 = vmatprep.subr.mxu0 0.0
    %1036 = vmatpush1.msra.mxu0 0.0
    %1037 = vmatprep.subr.mxu0 0.0
    %1038 = vmatpush1.msra.mxu0 0.0
    %1039 = vmatprep.subr.mxu0 0.0
    %1040 = vmatpush1.msra.mxu0 0.0
    %1041 = vmatprep.subr.mxu0 0.0
    %1042 = vmatpush1.msra.mxu0 0.0
    %1043 = vmatprep.subr.mxu0 0.0
    %1044 = vmatpush1.msra.mxu0 0.0
    %1045 = vmatprep.subr.mxu0 0.0
    %1046 = vmatpush1.msra.mxu0 0.0
    %1047 = vmatprep.subr.mxu0 0.0
    %1048 = vmatpush1.msra.mxu0 0.0
    %1049 = vmatprep.subr.mxu0 0.0
    %1050 = vmatpush1.msra.mxu0 0.0
    %1051 = vmatprep.subr.mxu0 0.0
    %1052 = vmatpush1.msra.mxu0 0.0
    %1053 = vmatprep.subr.mxu0 0.0
    %1054 = vmatpush1.msra.mxu0 0.0
    %1055 = vmatprep.subr.mxu0 0.0
    %1056 = vmatpush1.msra.mxu0 0.0
    %1057 = vmatprep.subr.mxu0 0.0
    %1058 = vmatpush1.msra.mxu0 0.0
    %1059 = vmatprep.subr.mxu0 0.0
    %1060 = vmatpush1.msra.mxu0 0.0
    %1061 = vmatprep.subr.mxu0 0.0
    %1062 = vmatpush1.msra.mxu0 0.0
    %1063 = vmatprep.subr.mxu0 0.0
    %1064 = vmatpush1.msra.mxu0 0.0
    %1065 = vmatprep.subr.mxu0 0.0
    %1066 = vmatpush1.msra.mxu0 0.0
    %1067 = vmatprep.subr.mxu0 0.0
    %1068 = vmatpush1.msra.mxu0 0.0
    %1069 = vmatprep.subr.mxu0 0.0
    %1070 = vmatpush1.msra.mxu0 0.0
    %1071 = vmatprep.subr.mxu0 0.0
    %1072 = vmatpush1.msra.mxu0 0.0
    %1073 = vmatprep.subr.mxu0 0.0
    %1074 = vmatpush1.msra.mxu0 0.0
    %1075 = vmatprep.subr.mxu0 0.0
    %1076 = vmatpush1.msra.mxu0 0.0
    %1077 = vmatprep.subr.mxu0 0.0
    %1078 = vmatpush1.msra.mxu0 0.0
    %1079 = vmatprep.subr.mxu0 0.0
    %1080 = vmatpush1.msra.mxu0 0.0
    %1081 = vmatprep.mubr.f32.mxu0 0.0
    %1082 = vmatmul.mubr.f32.gmra.mrb[0].mxu0 %v1015
    %v1083 = vpop.f32.mrb[0].mxu0
    %v1084 = vadd.f32 %v1009, %v1083
    %v1085 = vpop.f32.mrb[0].mxu0
    %1086 = vdwg.mxu0
    %v1087 = vmax.f32 %v1084, 0.0
    %vm1088 = vcmask 25600
    %1089 = vst.msk [vmem:[#allocation2] sm:$0x3] %vm1088, %v1087
    // Predicated region
    $region34: #{gru_model_forward.1} parent=1 // pred_check
      _
    $region35: #{gru_model_forward.1} parent=1 // pred_check_branch
      %1091 = sbr.rel (0) target = $region37
    $region36: #{gru_model_forward.1} parent=1 // pred_region
      %s1093 = ssub.s32 32, 32
      %1094 = vsyncadd [#allocation3], %s1093
      %s1096 = sshll.u32 [#allocation2], 4
      %s1097 = int_to_ptr.vmem [resolvable:$true] %s1096
      %1099 = dma.vmem_to_hbm [thread:$0]  %s1097, 32, %s8, [#allocation3]
    $region37: #{gru_model_forward.1} parent=1 // pred_fallthru
      _
    // Predicated region
    $region38: #{gru_model_forward.1} parent=1 // pred_check
      _
    $region39: #{gru_model_forward.1} parent=1 // pred_check_branch
      %1101 = sbr.rel (0) target = $region41
    $region40: #{gru_model_forward.1} parent=1 // pred_region
      %1102 = dma.done [#allocation3], 32
    $region41: #{gru_model_forward.1} parent=1 // pred_fallthru
      _
    %1103 = vsyncpa [#allocation3], 1

</llo_original>
